<compile_context>
chip_gen: v6e
topology: v6e:2x2x1
jax: 0.10.0
libtpu: 0.0.40
codegen_flags: <defaults>
</compile_context>

<pallas_src>
import jax
import jax.numpy as jnp
from jax.experimental import pallas as pl
from jax.experimental.pallas import tpu as pltpu


_VMEM = pl.BlockSpec(memory_space=pltpu.MemorySpace.VMEM)


def _round_up(v, m):
    return (v + m - 1) // m * m


# ----------------------------- Pallas kernel --------------------------------

def make_fused_relcnn_kernel(num_layers, c_out):
    """Whole RelCNN forward (all RelConv layers + final Linear) in one kernel.

    Positional ref layout:
      refs[0]                   x0      [Np, C_in]   bf16
      refs[1]                   a12     [Np, 2*Np]   bf16   ([A1 | A2])
      refs[2      : 2+L]        wcat_l  [C_l, 128]   bf16   ([W1 | W2 | Wr | 0])
      refs[2+L    : 2+2L]       bcat_l  [1,   128]   f32    (root bias slot)
      refs[2+2L   : 3+3L]       wf_l    [C_l, 128]   bf16   (final-Linear slices)
      refs[3+3L]                bf      [1,   128]   f32
      refs[4+3L]                out     [Np,  128]   f32
    """
    def kernel(*refs):
        x0_ref, a12_ref = refs[0], refs[1]
        wcat_refs = refs[2:2 + num_layers]
        bcat_refs = refs[2 + num_layers:2 + 2 * num_layers]
        wf_refs = refs[2 + 2 * num_layers:3 + 3 * num_layers]
        bf_ref = refs[3 + 3 * num_layers]
        o_ref = refs[4 + 3 * num_layers]

        a12 = a12_ref[...]                       # bf16, VMEM-resident across layers
        x = x0_ref[...]                          # bf16 running node features

        # Final Linear accumulated on the fly: sum_l x_l @ Wf_slice_l (+ bias),
        # so the concat([x0, ..., xL]) is never materialized.
        acc = jnp.dot(x, wf_refs[0][...],
                      preferred_element_type=jnp.float32) + bf_ref[...]

        for l in range(num_layers):              # static -> unrolled at trace time
            # Fused projections: one 128-lane MXU pass = lin1 | lin2 | root.
            h = jnp.dot(x, wcat_refs[l][...],
                        preferred_element_type=jnp.float32) + bcat_refs[l][...]
            h1 = h[:, 0:c_out]
            h2 = h[:, c_out:2 * c_out]
            hr = h[:, 2 * c_out:3 * c_out]       # root(x), bias already added
            # Stacked mean aggregation: [A1 | A2] @ [h1 ; h2] in one MXU pass.
            # TODO(synk): for layer 0 (C_in < C_out) reassociating to
            # (A @ x) @ W would cut the N^2 FLOP term by C_out/C_in, at the cost
            # of unfusing that layer's projections.
            h12 = jnp.concatenate([h1, h2], axis=0).astype(jnp.bfloat16)
            agg = jnp.dot(a12, h12, preferred_element_type=jnp.float32)
            x = jnp.maximum(hr + agg, 0.0).astype(jnp.bfloat16)   # fused ReLU
            acc = acc + jnp.dot(x, wf_refs[l + 1][...],
                                preferred_element_type=jnp.float32)

        o_ref[...] = acc                         # lane-dense [Np, 128] store

    return kernel


# ------------------------------ JAX glue -------------------------------------

def build_aggregation_matrices(edge, num_nodes):
    """Dense row-normalized aggregation matrices for PyG scatter-mean.

    A1[i, j] = (#edges j->i) / (#edges with target i)   (flow source_to_target)
    A2[i, j] = (#edges i->j) / (#edges with source i)   (flow target_to_source)
    Rows with no incident edges are all-zero (PyG scatter-mean of empty = 0).
    """
    src, dst = edge[0], edge[1]
    cnt1 = jnp.zeros((num_nodes, num_nodes), jnp.float32).at[dst, src].add(1.0)
    deg1 = cnt1.sum(axis=1, keepdims=True)
    a1 = cnt1 / jnp.where(deg1 > 0, deg1, 1.0)

    cnt2 = jnp.zeros((num_nodes, num_nodes), jnp.float32).at[src, dst].add(1.0)
    deg2 = cnt2.sum(axis=1, keepdims=True)
    a2 = cnt2 / jnp.where(deg2 > 0, deg2, 1.0)
    return a1, a2


def linear_params(key, fan_in, fan_out, bias=True):
    """Deterministic PyTorch-style Linear init, weight stored as [in, out]."""
    kw, kb = jax.random.split(key)
    bound = 1.0 / (fan_in ** 0.5)
    w = jax.random.uniform(kw, (fan_in, fan_out), jnp.float32, -bound, bound)
    if not bias:
        return w
    b = jax.random.uniform(kb, (1, fan_out), jnp.float32, -bound, bound)
    return w, b


def init_relcnn_params(key, in_channels, out_channels, num_layers):
    layers = []
    c_in = in_channels
    for _ in range(num_layers):
        key, k1, k2, k3 = jax.random.split(key, 4)
        w1 = linear_params(k1, c_in, out_channels, bias=False)
        w2 = linear_params(k2, c_in, out_channels, bias=False)
        wr, br = linear_params(k3, c_in, out_channels, bias=True)
        layers.append((w1, w2, wr, br))
        c_in = out_channels
    c_final_in = in_channels + num_layers * out_channels   # cat=True
    key, kf = jax.random.split(key)
    final = linear_params(kf, c_final_in, out_channels, bias=True)
    return {"layers": layers, "final": final}


def pack_params(params, in_channels, out_channels):
    """Pack per-layer (W1, W2, Wr, br) into 128-lane slabs + final-W slices."""
    num_layers = len(params["layers"])
    ccat = _round_up(3 * out_channels, 128)
    cf = _round_up(out_channels, 128)

    wcat_list, bcat_list = [], []
    for (w1, w2, wr, br) in params["layers"]:
        c_in = w1.shape[0]
        wcat = jnp.zeros((c_in, ccat), jnp.float32)
        wcat = wcat.at[:, 0:out_channels].set(w1)
        wcat = wcat.at[:, out_channels:2 * out_channels].set(w2)
        wcat = wcat.at[:, 2 * out_channels:3 * out_channels].set(wr)
        bcat = jnp.zeros((1, ccat), jnp.float32)
        bcat = bcat.at[:, 2 * out_channels:3 * out_channels].set(br)
        wcat_list.append(wcat.astype(jnp.bfloat16))
        bcat_list.append(bcat)

    wf, bfin = params["final"]
    wf_slices = []
    wf0 = jnp.zeros((in_channels, cf), jnp.float32)
    wf0 = wf0.at[:, :out_channels].set(wf[:in_channels])
    wf_slices.append(wf0.astype(jnp.bfloat16))
    off = in_channels
    for _ in range(num_layers):
        sl = jnp.zeros((out_channels, cf), jnp.float32)
        sl = sl.at[:, :out_channels].set(wf[off:off + out_channels])
        wf_slices.append(sl.astype(jnp.bfloat16))
        off += out_channels
    bf_pad = jnp.zeros((1, cf), jnp.float32).at[:, :out_channels].set(bfin)
    return wcat_list, bcat_list, wf_slices, bf_pad


def relcnn_forward(params, x, edge, edge_weight=None):
    # TODO(synk): the edge_weight branch of RelConv passes `norm` to propagate,
    # but `message(x_j)` ignores it, so it reduces to the same unweighted mean
    # aggregation; only the edge_weight=None path is implemented.
    # TODO(synk): batch_norm / dropout / cat=False / lin=False variants are not
    # implemented in the fused kernel (module defaults: batch_norm=False,
    # cat=True, lin=True, dropout=0.0).
    n, c_in = x.shape
    num_layers = len(params["layers"])
    c_out = params["layers"][0][0].shape[1]

    np_ = _round_up(max(n, 8), 8)
    a1, a2 = build_aggregation_matrices(edge, n)
    # Stacked, zero-padded, row-normalized aggregation matrix [A1 | A2] (bf16).
    # TODO(synk): at large N the resident [Np, 2Np] A12 must be replaced by a
    # row/column-tiled grid (accumulator scratch + pl.when init/finalize,
    # "parallel" row axis for v7x's 2 TCs) or an edge-list segment-mean kernel;
    # resident bf16 A12 only fits VMEM up to roughly N~3.5k on v7x (64 MiB).
    a12 = jnp.zeros((np_, 2 * np_), jnp.float32)
    a12 = a12.at[:n, :n].set(a1).at[:n, np_:np_ + n].set(a2)
    a12 = a12.astype(jnp.bfloat16)

    x0 = jnp.zeros((np_, c_in), jnp.float32).at[:n].set(x).astype(jnp.bfloat16)

    wcat_l, bcat_l, wf_l, bf_pad = pack_params(params, c_in, c_out)
    cf = wf_l[0].shape[1]

    kernel = make_fused_relcnn_kernel(num_layers, c_out)
    n_inputs = 2 + 2 * num_layers + (num_layers + 1) + 1
    out = pl.pallas_call(
        kernel,
        out_shape=jax.ShapeDtypeStruct((np_, cf), jnp.float32),
        in_specs=[_VMEM] * n_inputs,
        out_specs=_VMEM,
        compiler_params=pltpu.CompilerParams(vmem_limit_bytes=32 * 1024 * 1024),
    )(x0, a12, *wcat_l, *bcat_l, *wf_l, bf_pad)
    return out[:n, :c_out]


# Pure-JAX f32 reference (exact module math, no Pallas, no bf16).
def relcnn_reference(params, x, edge):
    n = x.shape[0]
    a1, a2 = build_aggregation_matrices(edge, n)
    xs = [x]
    for (w1, w2, wr, br) in params["layers"]:
        h = xs[-1]
        out = h @ wr + br + a1 @ (h @ w1) + a2 @ (h @ w2)
        xs.append(jnp.maximum(out, 0.0))
    h = jnp.concatenate(xs, axis=-1)
    wf, bfin = params["final"]
    return h @ wf + bfin


# --------------------------------- main ---------------------------------------

if __name__ == "__main__":
    key = jax.random.PRNGKey(0)
    k_x, k_e, k_p = jax.random.split(key, 3)

    num_nodes = 16
    num_edges = 48
    in_channels = 8
    out_channels = 32
    num_layers = 2

    x = jax.random.normal(k_x, (num_nodes, in_channels), jnp.float32)
    edge = jax.random.randint(k_e, (2, num_edges), 0, num_nodes, jnp.int32)
    edge_weight = None

    params = init_relcnn_params(k_p, in_channels, out_channels, num_layers)

    out = jax.block_until_ready(relcnn_forward(params, x, edge, edge_weight))
    ref = jax.block_until_ready(relcnn_reference(params, x, edge))

    assert out.shape == (num_nodes, out_channels)
    # bf16 A12/weights with f32 accumulation -> ~1e-2-level relative error vs
    # the exact f32 reference (tolerance loosened per the perf review).
    assert jnp.allclose(out, ref, atol=1e-1, rtol=5e-2), float(
        jnp.max(jnp.abs(out - ref)))

    print("KERNEL_OK")
</pallas_src>

<mosaic_0001>
module attributes {stable_mosaic.version = 11 : i64} {
  func.func @kernel(%arg0: memref<16x8xbf16, #tpu.memory_space<vmem>>, %arg1: memref<16x32xbf16, #tpu.memory_space<vmem>>, %arg2: memref<8x128xbf16, #tpu.memory_space<vmem>>, %arg3: memref<32x128xbf16, #tpu.memory_space<vmem>>, %arg4: memref<1x128xf32, #tpu.memory_space<vmem>>, %arg5: memref<1x128xf32, #tpu.memory_space<vmem>>, %arg6: memref<8x128xbf16, #tpu.memory_space<vmem>>, %arg7: memref<32x128xbf16, #tpu.memory_space<vmem>>, %arg8: memref<32x128xbf16, #tpu.memory_space<vmem>>, %arg9: memref<1x128xf32, #tpu.memory_space<vmem>>, %arg10: memref<16x128xf32, #tpu.memory_space<vmem>>) attributes {dimension_semantics = [], scalar_prefetch = 0 : i64, scratch_operands = 0 : i64, tpu.core_type = #tpu.core_type<tc>} {
    %c0 = arith.constant 0 : index
    %c0_0 = arith.constant 0 : index
    %0 = vector.load %arg1[%c0, %c0_0] : memref<16x32xbf16, #tpu.memory_space<vmem>>, vector<16x32xbf16>
    %c0_1 = arith.constant 0 : index
    %c0_2 = arith.constant 0 : index
    %1 = vector.load %arg0[%c0_1, %c0_2] : memref<16x8xbf16, #tpu.memory_space<vmem>>, vector<16x8xbf16>
    %c0_3 = arith.constant 0 : index
    %c0_4 = arith.constant 0 : index
    %2 = vector.load %arg6[%c0_3, %c0_4] : memref<8x128xbf16, #tpu.memory_space<vmem>>, vector<8x128xbf16>
    %cst = arith.constant dense<0.000000e+00> : vector<16x128xf32>
    %3 = tpu.matmul %1, %2, %cst {dimension_numbers = #tpu.dot_dimension_numbers<[1], [0], [0], [1], [0, 0, 1, 1], [], []>} : vector<16x8xbf16>, vector<8x128xbf16>, vector<16x128xf32> -> vector<16x128xf32>
    %c0_5 = arith.constant 0 : index
    %c0_6 = arith.constant 0 : index
    %4 = vector.load %arg9[%c0_5, %c0_6] : memref<1x128xf32, #tpu.memory_space<vmem>>, vector<1x128xf32>
    %5 = vector.broadcast %4 : vector<1x128xf32> to vector<16x128xf32>
    %6 = arith.addf %3, %5 : vector<16x128xf32>
    %c0_7 = arith.constant 0 : index
    %c0_8 = arith.constant 0 : index
    %7 = vector.load %arg2[%c0_7, %c0_8] : memref<8x128xbf16, #tpu.memory_space<vmem>>, vector<8x128xbf16>
    %cst_9 = arith.constant dense<0.000000e+00> : vector<16x128xf32>
    %8 = tpu.matmul %1, %7, %cst_9 {dimension_numbers = #tpu.dot_dimension_numbers<[1], [0], [0], [1], [0, 0, 1, 1], [], []>} : vector<16x8xbf16>, vector<8x128xbf16>, vector<16x128xf32> -> vector<16x128xf32>
    %c0_10 = arith.constant 0 : index
    %c0_11 = arith.constant 0 : index
    %9 = vector.load %arg4[%c0_10, %c0_11] : memref<1x128xf32, #tpu.memory_space<vmem>>, vector<1x128xf32>
    %10 = vector.broadcast %9 : vector<1x128xf32> to vector<16x128xf32>
    %11 = arith.addf %8, %10 : vector<16x128xf32>
    %12 = vector.extract_strided_slice %11 {offsets = [0, 0], sizes = [16, 32], strides = [1, 1]} : vector<16x128xf32> to vector<16x32xf32>
    %13 = vector.extract_strided_slice %11 {offsets = [0, 32], sizes = [16, 32], strides = [1, 1]} : vector<16x128xf32> to vector<16x32xf32>
    %14 = vector.extract_strided_slice %11 {offsets = [0, 64], sizes = [16, 32], strides = [1, 1]} : vector<16x128xf32> to vector<16x32xf32>
    %15 = tpu.concatenate %12, %13 in 0 : vector<16x32xf32>, vector<16x32xf32> -> vector<32x32xf32>
    %16 = arith.truncf %15 : vector<32x32xf32> to vector<32x32xbf16>
    %cst_12 = arith.constant dense<0.000000e+00> : vector<16x32xf32>
    %17 = tpu.matmul %0, %16, %cst_12 {dimension_numbers = #tpu.dot_dimension_numbers<[1], [0], [0], [1], [0, 0, 1, 1], [], []>} : vector<16x32xbf16>, vector<32x32xbf16>, vector<16x32xf32> -> vector<16x32xf32>
    %18 = arith.addf %14, %17 : vector<16x32xf32>
    %cst_13 = arith.constant 0.000000e+00 : f32
    %19 = vector.broadcast %cst_13 : f32 to vector<16x32xf32>
    %20 = arith.maximumf %18, %19 : vector<16x32xf32>
    %21 = arith.truncf %20 : vector<16x32xf32> to vector<16x32xbf16>
    %c0_14 = arith.constant 0 : index
    %c0_15 = arith.constant 0 : index
    %22 = vector.load %arg7[%c0_14, %c0_15] : memref<32x128xbf16, #tpu.memory_space<vmem>>, vector<32x128xbf16>
    %cst_16 = arith.constant dense<0.000000e+00> : vector<16x128xf32>
    %23 = tpu.matmul %21, %22, %cst_16 {dimension_numbers = #tpu.dot_dimension_numbers<[1], [0], [0], [1], [0, 0, 1, 1], [], []>} : vector<16x32xbf16>, vector<32x128xbf16>, vector<16x128xf32> -> vector<16x128xf32>
    %24 = arith.addf %6, %23 : vector<16x128xf32>
    %c0_17 = arith.constant 0 : index
    %c0_18 = arith.constant 0 : index
    %25 = vector.load %arg3[%c0_17, %c0_18] : memref<32x128xbf16, #tpu.memory_space<vmem>>, vector<32x128xbf16>
    %cst_19 = arith.constant dense<0.000000e+00> : vector<16x128xf32>
    %26 = tpu.matmul %21, %25, %cst_19 {dimension_numbers = #tpu.dot_dimension_numbers<[1], [0], [0], [1], [0, 0, 1, 1], [], []>} : vector<16x32xbf16>, vector<32x128xbf16>, vector<16x128xf32> -> vector<16x128xf32>
    %c0_20 = arith.constant 0 : index
    %c0_21 = arith.constant 0 : index
    %27 = vector.load %arg5[%c0_20, %c0_21] : memref<1x128xf32, #tpu.memory_space<vmem>>, vector<1x128xf32>
    %28 = vector.broadcast %27 : vector<1x128xf32> to vector<16x128xf32>
    %29 = arith.addf %26, %28 : vector<16x128xf32>
    %30 = vector.extract_strided_slice %29 {offsets = [0, 0], sizes = [16, 32], strides = [1, 1]} : vector<16x128xf32> to vector<16x32xf32>
    %31 = vector.extract_strided_slice %29 {offsets = [0, 32], sizes = [16, 32], strides = [1, 1]} : vector<16x128xf32> to vector<16x32xf32>
    %32 = vector.extract_strided_slice %29 {offsets = [0, 64], sizes = [16, 32], strides = [1, 1]} : vector<16x128xf32> to vector<16x32xf32>
    %33 = tpu.concatenate %30, %31 in 0 : vector<16x32xf32>, vector<16x32xf32> -> vector<32x32xf32>
    %34 = arith.truncf %33 : vector<32x32xf32> to vector<32x32xbf16>
    %cst_22 = arith.constant dense<0.000000e+00> : vector<16x32xf32>
    %35 = tpu.matmul %0, %34, %cst_22 {dimension_numbers = #tpu.dot_dimension_numbers<[1], [0], [0], [1], [0, 0, 1, 1], [], []>} : vector<16x32xbf16>, vector<32x32xbf16>, vector<16x32xf32> -> vector<16x32xf32>
    %36 = arith.addf %32, %35 : vector<16x32xf32>
    %cst_23 = arith.constant 0.000000e+00 : f32
    %37 = vector.broadcast %cst_23 : f32 to vector<16x32xf32>
    %38 = arith.maximumf %36, %37 : vector<16x32xf32>
    %39 = arith.truncf %38 : vector<16x32xf32> to vector<16x32xbf16>
    %c0_24 = arith.constant 0 : index
    %c0_25 = arith.constant 0 : index
    %40 = vector.load %arg8[%c0_24, %c0_25] : memref<32x128xbf16, #tpu.memory_space<vmem>>, vector<32x128xbf16>
    %cst_26 = arith.constant dense<0.000000e+00> : vector<16x128xf32>
    %41 = tpu.matmul %39, %40, %cst_26 {dimension_numbers = #tpu.dot_dimension_numbers<[1], [0], [0], [1], [0, 0, 1, 1], [], []>} : vector<16x32xbf16>, vector<32x128xbf16>, vector<16x128xf32> -> vector<16x128xf32>
    %42 = arith.addf %24, %41 : vector<16x128xf32>
    %c0_27 = arith.constant 0 : index
    %c0_28 = arith.constant 0 : index
    %43 = vector.load %arg10[%c0_27, %c0_28] : memref<16x128xf32, #tpu.memory_space<vmem>>, vector<16x128xf32>
    tpu.vector_store %arg10[%c0_27, %c0_28], %42 {strides = array<i32>} : memref<16x128xf32, #tpu.memory_space<vmem>>, vector<16x128xf32>,
    return
  }
}

</mosaic_0001>

<llo_original>
// kernel: tpu_custom_call.1
$region0: #{tpu_custom_call.1}
  #allocation0 [shape = 'u32[]', space=smem, size = 0x4, offset = 0x4, fixed_abs, tag = 'smem constant byte address 0x4 - core index']
  #allocation1 [shape = 'u32[144,128]{1,0:T(1,128)}', space=vmem, size = 0x12000, scoped, tag = 'internal scratch']
  %s0 = inlined_call_operand.vmem [shape: bf16[16,8], index: 0, kind: input, shape index: {}]
  %s1 = inlined_call_operand.hbm [shape: bf16[16,32], index: 1, kind: input, shape index: {}]
  %s2 = inlined_call_operand.hbm [shape: bf16[8,128], index: 2, kind: input, shape index: {}]
  %s3 = inlined_call_operand.vmem [shape: bf16[32,128], index: 3, kind: input, shape index: {}]
  %s4 = inlined_call_operand.vmem [shape: f32[1,128], index: 4, kind: input, shape index: {}]
  %s5 = inlined_call_operand.hbm [shape: f32[1,128], index: 5, kind: input, shape index: {}]
  %s6 = inlined_call_operand.vmem [shape: bf16[8,128], index: 6, kind: input, shape index: {}]
  %s7 = inlined_call_operand.hbm [shape: bf16[32,128], index: 7, kind: input, shape index: {}]
  %s8 = inlined_call_operand.hbm [shape: bf16[32,128], index: 8, kind: input, shape index: {}]
  %s9 = inlined_call_operand.vmem [shape: f32[1,128], index: 9, kind: input, shape index: {}]
  %s10 = inlined_call_operand.hbm [shape: f32[16,128], index: 10, kind: output, shape index: {}]
  %s11 = sld [smem:[#allocation0]]
  $region70: #{tpu_custom_call.1} parent=0
    _
  %s13 = ssub.s32 1, %s11
  %s14 = scalar_select 0, %s13, %s11
  $region1: #{tpu_custom_call.1} parent=0
    #allocation2 [shape = 'u8[4096]{0}', space=vmem, size = 0x1000, scoped, tag = 'input window, operand 1, single buffered']
    #allocation3 [shape = 's32[1]{0}', space=sflag, size = 0x4, scoped, tag = 'scoped memory for tpu_custom_call.1']
    #allocation4 [shape = 's32[1]{0}', space=sflag, size = 0x4, scoped, tag = 'scoped memory for tpu_custom_call.1']
    #allocation5 [shape = 'u8[2048]{0}', space=vmem, size = 0x800, scoped, tag = 'input window, operand 2, single buffered']
    #allocation6 [shape = 's32[1]{0}', space=sflag, size = 0x4, scoped, tag = 'scoped memory for tpu_custom_call.1']
    #allocation7 [shape = 'u8[512]{0}', space=vmem, size = 0x400, scoped, tag = 'input window, operand 5, single buffered']
    #allocation8 [shape = 'u8[8192]{0}', space=vmem, size = 0x2000, scoped, tag = 'input window, operand 7, single buffered']
    #allocation9 [shape = 's32[1]{0}', space=sflag, size = 0x4, scoped, tag = 'scoped memory for tpu_custom_call.1']
    #allocation10 [shape = 'u8[8192]{0}', space=vmem, size = 0x2000, scoped, tag = 'input window, operand 8, single buffered']
    #allocation11 [shape = 'u8[8192]{0}', space=vmem, size = 0x2000, scoped, tag = 'output window, operand 0, single buffered']
    %15 = vsyncpa [#allocation3], 0
    %16 = vsyncpa [#allocation6], 0
    %17 = vsyncpa [#allocation9], 0
    %18 = vsyncpa [#allocation4], 0
    // Predicated region
    $region2: #{tpu_custom_call.1} parent=1 // pred_check
      _
    $region3: #{tpu_custom_call.1} parent=1 // pred_check_branch
      %20 = sbr.rel (0) target = $region5
    $region4: #{tpu_custom_call.1} parent=1 // pred_region
      _
    $region5: #{tpu_custom_call.1} parent=1 // pred_fallthru
      _
    // Predicated region
    $region6: #{tpu_custom_call.1} parent=1 // pred_check
      _
    $region7: #{tpu_custom_call.1} parent=1 // pred_check_branch
      %22 = sbr.rel (0) target = $region9
    $region8: #{tpu_custom_call.1} parent=1 // pred_region
      %s24 = ssub.s32 128, 128
      %25 = vsyncadd [#allocation3], %s24
      %s26 = sshll.u32 [#allocation2], 4
      %s27 = int_to_ptr.vmem [resolvable:$true] %s26
      %32 = dma.hbm_to_vmem [thread:$0]  %s1, 128, %s27, [#allocation3], 64, 64, 4
    $region9: #{tpu_custom_call.1} parent=1 // pred_fallthru
      _
    // Predicated region
    $region10: #{tpu_custom_call.1} parent=1 // pred_check
      _
    $region11: #{tpu_custom_call.1} parent=1 // pred_check_branch
      %34 = sbr.rel (0) target = $region13
    $region12: #{tpu_custom_call.1} parent=1 // pred_region
      %s36 = ssub.s32 64, 64
      %37 = vsyncadd [#allocation6], %s36
      %s39 = sshll.u32 [#allocation5], 4
      %s40 = int_to_ptr.vmem [resolvable:$true] %s39
      %42 = dma.hbm_to_vmem [thread:$0]  %s2, 64, %s40, [#allocation6]
    $region13: #{tpu_custom_call.1} parent=1 // pred_fallthru
      _
    // Predicated region
    $region14: #{tpu_custom_call.1} parent=1 // pred_check
      _
    $region15: #{tpu_custom_call.1} parent=1 // pred_check_branch
      %44 = sbr.rel (0) target = $region17
    $region16: #{tpu_custom_call.1} parent=1 // pred_region
      _
    $region17: #{tpu_custom_call.1} parent=1 // pred_fallthru
      _
    // Predicated region
    $region18: #{tpu_custom_call.1} parent=1 // pred_check
      _
    $region19: #{tpu_custom_call.1} parent=1 // pred_check_branch
      %46 = sbr.rel (0) target = $region21
    $region20: #{tpu_custom_call.1} parent=1 // pred_region
      _
    $region21: #{tpu_custom_call.1} parent=1 // pred_fallthru
      _
    // Predicated region
    $region22: #{tpu_custom_call.1} parent=1 // pred_check
      _
    $region23: #{tpu_custom_call.1} parent=1 // pred_check_branch
      %48 = sbr.rel (0) target = $region25
    $region24: #{tpu_custom_call.1} parent=1 // pred_region
      %s50 = ssub.s32 16, 16
      %51 = vsyncadd [#allocation6], %s50
      %s53 = sshll.u32 [#allocation7], 4
      %s54 = int_to_ptr.vmem [resolvable:$true] %s53
      %56 = dma.hbm_to_vmem [thread:$0]  %s5, 16, %s54, [#allocation6]
    $region25: #{tpu_custom_call.1} parent=1 // pred_fallthru
      _
    // Predicated region
    $region26: #{tpu_custom_call.1} parent=1 // pred_check
      _
    $region27: #{tpu_custom_call.1} parent=1 // pred_check_branch
      %58 = sbr.rel (0) target = $region29
    $region28: #{tpu_custom_call.1} parent=1 // pred_region
      _
    $region29: #{tpu_custom_call.1} parent=1 // pred_fallthru
      _
    // Predicated region
    $region30: #{tpu_custom_call.1} parent=1 // pred_check
      _
    $region31: #{tpu_custom_call.1} parent=1 // pred_check_branch
      %60 = sbr.rel (0) target = $region33
    $region32: #{tpu_custom_call.1} parent=1 // pred_region
      %s62 = ssub.s32 256, 256
      %63 = vsyncadd [#allocation9], %s62
      %s64 = sshll.u32 [#allocation8], 4
      %s65 = int_to_ptr.vmem [resolvable:$true] %s64
      %70 = dma.hbm_to_vmem [thread:$0]  %s7, 256, %s65, [#allocation9], 64, 64, 4
    $region33: #{tpu_custom_call.1} parent=1 // pred_fallthru
      _
    // Predicated region
    $region34: #{tpu_custom_call.1} parent=1 // pred_check
      _
    $region35: #{tpu_custom_call.1} parent=1 // pred_check_branch
      %72 = sbr.rel (0) target = $region37
    $region36: #{tpu_custom_call.1} parent=1 // pred_region
      %s74 = ssub.s32 256, 256
      %75 = vsyncadd [#allocation9], %s74
      %s76 = sshll.u32 [#allocation10], 4
      %s77 = int_to_ptr.vmem [resolvable:$true] %s76
      %82 = dma.hbm_to_vmem [thread:$0]  %s8, 256, %s77, [#allocation9], 64, 64, 4
    $region37: #{tpu_custom_call.1} parent=1 // pred_fallthru
      _
    // Predicated region
    $region38: #{tpu_custom_call.1} parent=1 // pred_check
      _
    $region39: #{tpu_custom_call.1} parent=1 // pred_check_branch
      %84 = sbr.rel (0) target = $region41
    $region40: #{tpu_custom_call.1} parent=1 // pred_region
      _
    $region41: #{tpu_custom_call.1} parent=1 // pred_fallthru
      _
    // Predicated region
    $region42: #{tpu_custom_call.1} parent=1 // pred_check
      _
    $region43: #{tpu_custom_call.1} parent=1 // pred_check_branch
      %86 = sbr.rel (0) target = $region45
    $region44: #{tpu_custom_call.1} parent=1 // pred_region
      %87 = dma.done [#allocation3], 128
    $region45: #{tpu_custom_call.1} parent=1 // pred_fallthru
      _
    // Predicated region
    $region46: #{tpu_custom_call.1} parent=1 // pred_check
      _
    $region47: #{tpu_custom_call.1} parent=1 // pred_check_branch
      %89 = sbr.rel (0) target = $region49
    $region48: #{tpu_custom_call.1} parent=1 // pred_region
      %90 = dma.done [#allocation6], 64
    $region49: #{tpu_custom_call.1} parent=1 // pred_fallthru
      _
    // Predicated region
    $region50: #{tpu_custom_call.1} parent=1 // pred_check
      _
    $region51: #{tpu_custom_call.1} parent=1 // pred_check_branch
      %92 = sbr.rel (0) target = $region53
    $region52: #{tpu_custom_call.1} parent=1 // pred_region
      %93 = dma.done [#allocation6], 16
    $region53: #{tpu_custom_call.1} parent=1 // pred_fallthru
      _
    // Predicated region
    $region54: #{tpu_custom_call.1} parent=1 // pred_check
      _
    $region55: #{tpu_custom_call.1} parent=1 // pred_check_branch
      %95 = sbr.rel (0) target = $region57
    $region56: #{tpu_custom_call.1} parent=1 // pred_region
      %96 = dma.done [#allocation9], 256
    $region57: #{tpu_custom_call.1} parent=1 // pred_fallthru
      _
    // Predicated region
    $region58: #{tpu_custom_call.1} parent=1 // pred_check
      _
    $region59: #{tpu_custom_call.1} parent=1 // pred_check_branch
      %98 = sbr.rel (0) target = $region61
    $region60: #{tpu_custom_call.1} parent=1 // pred_region
      %99 = dma.done [#allocation9], 256
    $region61: #{tpu_custom_call.1} parent=1 // pred_fallthru
      _
    %v101 = vld [vmem:[#allocation2] sm:$0xf]
    %v102 = vld [vmem:[#allocation2 + $0x4] sm:$0xf]
    %v103 = vld [vmem:[%s0] sm:$0xf]
    %v104 = vld [vmem:[%s0 + $0x4] sm:$0xf]
    %v105 = vld [vmem:[%s6] sm:$0xf]
    %v106 = vld [vmem:[%s9] sm:$0x1]
    %v108 = vlaneseq
    %v109 = vshrl.u32 %v108, 7
    %v110 = vsub.s32 0, %v109
    %v111 = vrot.slane %v106, %v110
    %v115 = vunpack.c.l.b16 %v103
    %v116 = vunpack.c.l.b16 %v104
    %v117 = vpack.c.b16 %v116, %v115
    %vm118 = vcmask 64512
    %v120 = vsel %vm118, %v117, 0
    %vm122 = vcmask 1043456
    %v124 = vsel %vm122, %v105, 0
    %126 = vmatprep.subr.bf16.mxu0 0
    %127 = vmatpush1.bf16.msra.mxu0 0
    %128 = vmatprep.subr.bf16.mxu0 0
    %129 = vmatpush1.bf16.msra.mxu0 0
    %130 = vmatprep.subr.bf16.mxu0 0
    %131 = vmatpush1.bf16.msra.mxu0 0
    %132 = vmatprep.subr.bf16.mxu0 0
    %133 = vmatpush1.bf16.msra.mxu0 0
    %134 = vmatprep.subr.bf16.mxu0 0
    %135 = vmatpush1.bf16.msra.mxu0 0
    %136 = vmatprep.subr.bf16.mxu0 0
    %137 = vmatpush1.bf16.msra.mxu0 0
    %138 = vmatprep.subr.bf16.mxu0 0
    %139 = vmatpush1.bf16.msra.mxu0 0
    %140 = vmatprep.subr.bf16.mxu0 0
    %141 = vmatpush1.bf16.msra.mxu0 %v124
    %142 = vmatprep.subr.bf16.mxu0 0
    %143 = vmatpush2.bf16.msra.mxu0 0
    %144 = vmatprep.subr.bf16.mxu0 0
    %145 = vmatpush2.bf16.msra.mxu0 0
    %146 = vmatprep.subr.bf16.mxu0 0
    %147 = vmatpush2.bf16.msra.mxu0 0
    %148 = vmatprep.subr.bf16.mxu0 0
    %149 = vmatpush2.bf16.msra.mxu0 0
    %150 = vmatprep.subr.bf16.mxu0 0
    %151 = vmatpush2.bf16.msra.mxu0 0
    %152 = vmatprep.subr.bf16.mxu0 0
    %153 = vmatpush2.bf16.msra.mxu0 0
    %154 = vmatprep.subr.bf16.mxu0 0
    %155 = vmatpush2.bf16.msra.mxu0 0
    %156 = vmatprep.subr.bf16.mxu0 0
    %157 = vmatpush2.bf16.msra.mxu0 0
    %158 = vmatprep.mubr.bf16.mxu0 0
    %159 = vmatmul.mubr.bf16.gmra.mxu0 %v120
    %v160 = vpop.f32.mrf.mxu0
    %v161 = vadd.f32 %v111, %v160
    %v162 = vpop.f32.mrf.mxu0
    %v163 = vpop.f32.mrf.mxu0
    %v164 = vadd.f32 %v111, %v163
    %v165 = vpop.f32.mrf.mxu0
    %166 = vdwg.mxu0
    %v167 = vld [vmem:[#allocation5] sm:$0xf]
    %v168 = vld [vmem:[%s4] sm:$0x1]
    %v170 = vlaneseq
    %v171 = vshrl.u32 %v170, 7
    %v172 = vsub.s32 0, %v171
    %v173 = vrot.slane %v168, %v172
    %v176 = vsel %vm122, %v167, 0
    %178 = vmatprep.subr.bf16.mxu0 0
    %179 = vmatpush1.bf16.msra.mxu0 0
    %180 = vmatprep.subr.bf16.mxu0 0
    %181 = vmatpush1.bf16.msra.mxu0 0
    %182 = vmatprep.subr.bf16.mxu0 0
    %183 = vmatpush1.bf16.msra.mxu0 0
    %184 = vmatprep.subr.bf16.mxu0 0
    %185 = vmatpush1.bf16.msra.mxu0 0
    %186 = vmatprep.subr.bf16.mxu0 0
    %187 = vmatpush1.bf16.msra.mxu0 0
    %188 = vmatprep.subr.bf16.mxu0 0
    %189 = vmatpush1.bf16.msra.mxu0 0
    %190 = vmatprep.subr.bf16.mxu0 0
    %191 = vmatpush1.bf16.msra.mxu0 0
    %192 = vmatprep.subr.bf16.mxu0 0
    %193 = vmatpush1.bf16.msra.mxu0 %v176
    %194 = vmatprep.subr.bf16.mxu0 0
    %195 = vmatpush2.bf16.msra.mxu0 0
    %196 = vmatprep.subr.bf16.mxu0 0
    %197 = vmatpush2.bf16.msra.mxu0 0
    %198 = vmatprep.subr.bf16.mxu0 0
    %199 = vmatpush2.bf16.msra.mxu0 0
    %200 = vmatprep.subr.bf16.mxu0 0
    %201 = vmatpush2.bf16.msra.mxu0 0
    %202 = vmatprep.subr.bf16.mxu0 0
    %203 = vmatpush2.bf16.msra.mxu0 0
    %204 = vmatprep.subr.bf16.mxu0 0
    %205 = vmatpush2.bf16.msra.mxu0 0
    %206 = vmatprep.subr.bf16.mxu0 0
    %207 = vmatpush2.bf16.msra.mxu0 0
    %208 = vmatprep.subr.bf16.mxu0 0
    %209 = vmatpush2.bf16.msra.mxu0 0
    %210 = vmatprep.mubr.bf16.mxu0 0
    %211 = vmatmul.mubr.bf16.gmra.mxu0 %v120
    %v212 = vpop.f32.mrf.mxu0
    %v213 = vadd.f32 %v173, %v212
    %v214 = vpop.f32.mrf.mxu0
    %v215 = vpop.f32.mrf.mxu0
    %v216 = vadd.f32 %v173, %v215
    %v217 = vpop.f32.mrf.mxu0
    %218 = vdwg.mxu0
    %221 = vrot.lane.b32.xlu0 %v213, 96
    %v222 = vpop.permute.xlu0 %221
    %223 = vrot.lane.b32.xlu0 %v216, 96
    %v224 = vpop.permute.xlu0 %223
    %v227 = vpack.c.bf16 %v216, %v213
    %v228 = vpack.c.bf16 %v224, %v222
    %v231 = vunpack.c.l.b16 %v101
    %v232 = vunpack.c.l.b16 %v102
    %v233 = vpack.c.b16 %v232, %v231
    %vm234 = vcmask 261120
    %v236 = vsel %vm234, %v233, 0
    %238 = vmatprep.subr.bf16.mxu0 0
    %239 = vmatpush1.bf16.msra.mxu0 0
    %240 = vmatprep.subr.bf16.mxu0 0
    %241 = vmatpush1.bf16.msra.mxu0 0
    %242 = vmatprep.subr.bf16.mxu0 0
    %243 = vmatpush1.bf16.msra.mxu0 0
    %244 = vmatprep.subr.bf16.mxu0 0
    %245 = vmatpush1.bf16.msra.mxu0 0
    %246 = vmatprep.subr.bf16.mxu0 0
    %247 = vmatpush1.bf16.msra.mxu0 0
    %248 = vmatprep.subr.bf16.mxu0 0
    %249 = vmatpush1.bf16.msra.mxu0 0
    %250 = vmatprep.subr.bf16.mxu0 0
    %251 = vmatpush1.bf16.msra.mxu0 %v228
    %252 = vmatprep.subr.bf16.mxu0 0
    %253 = vmatpush1.bf16.msra.mxu0 %v227
    %254 = vmatprep.subr.bf16.mxu0 0
    %255 = vmatpush2.bf16.msra.mxu0 0
    %256 = vmatprep.subr.bf16.mxu0 0
    %257 = vmatpush2.bf16.msra.mxu0 0
    %258 = vmatprep.subr.bf16.mxu0 0
    %259 = vmatpush2.bf16.msra.mxu0 0
    %260 = vmatprep.subr.bf16.mxu0 0
    %261 = vmatpush2.bf16.msra.mxu0 0
    %262 = vmatprep.subr.bf16.mxu0 0
    %263 = vmatpush2.bf16.msra.mxu0 0
    %264 = vmatprep.subr.bf16.mxu0 0
    %265 = vmatpush2.bf16.msra.mxu0 0
    %266 = vmatprep.subr.bf16.mxu0 0
    %267 = vmatpush2.bf16.msra.mxu0 0
    %268 = vmatprep.subr.bf16.mxu0 0
    %269 = vmatpush2.bf16.msra.mxu0 0
    %270 = vmatprep.mubr.bf16.mxu0 0
    %271 = vmatmul.mubr.bf16.gmra.mxu0 %v236
    %v272 = vpop.f32.mrf.mxu0
    %v273 = vadd.f32 0.0, %v272
    %v274 = vpop.f32.mrf.mxu0
    %v275 = vpop.f32.mrf.mxu0
    %v276 = vadd.f32 0.0, %v275
    %v277 = vpop.f32.mrf.mxu0
    %278 = vdwg.mxu0
    %281 = vrot.lane.b32.xlu0 %v273, 64
    %v282 = vpop.permute.xlu0 %281
    %283 = vrot.lane.b32.xlu0 %v276, 64
    %v284 = vpop.permute.xlu0 %283
    %v287 = vadd.f32 %v213, %v282
    %v288 = vadd.f32 %v216, %v284
    %v289 = vmax.f32 %v287, 0.0
    %v290 = vmax.f32 %v288, 0.0
    %v291 = vpack.c.bf16 %v290, %v289
    %v292 = vld [vmem:[#allocation8] sm:$0xf]
    %v293 = vld [vmem:[#allocation8 + $0x4] sm:$0xf]
    %v294 = vld [vmem:[#allocation8 + $0x8] sm:$0xf]
    %v295 = vld [vmem:[#allocation8 + $0xc] sm:$0xf]
    %297 = vrot.lane.b32.xlu0 %v291, 64
    %v298 = vpop.permute.xlu0 %297
    %v303 = vunpack.c.l.b16 %v292
    %v304 = vunpack.c.l.b16 %v293
    %v305 = vunpack.c.l.b16 %v294
    %v306 = vunpack.c.l.b16 %v295
    %v307 = vpack.c.b16 %v304, %v303
    %v308 = vpack.c.b16 %v306, %v305
    %v312 = vsel %vm234, %v298, 0
    %314 = vmatprep.subr.bf16.mxu0 0
    %315 = vmatpush1.bf16.msra.mxu0 0
    %316 = vmatprep.subr.bf16.mxu0 0
    %317 = vmatpush1.bf16.msra.mxu0 0
    %318 = vmatprep.subr.bf16.mxu0 0
    %319 = vmatpush1.bf16.msra.mxu0 0
    %320 = vmatprep.subr.bf16.mxu0 0
    %321 = vmatpush1.bf16.msra.mxu0 0
    %322 = vmatprep.subr.bf16.mxu0 0
    %323 = vmatpush1.bf16.msra.mxu0 0
    %324 = vmatprep.subr.bf16.mxu0 0
    %325 = vmatpush1.bf16.msra.mxu0 0
    %326 = vmatprep.subr.bf16.mxu0 0
    %327 = vmatpush1.bf16.msra.mxu0 %v308
    %328 = vmatprep.subr.bf16.mxu0 0
    %329 = vmatpush1.bf16.msra.mxu0 %v307
    %330 = vmatprep.subr.bf16.mxu0 0
    %331 = vmatpush2.bf16.msra.mxu0 0
    %332 = vmatprep.subr.bf16.mxu0 0
    %333 = vmatpush2.bf16.msra.mxu0 0
    %334 = vmatprep.subr.bf16.mxu0 0
    %335 = vmatpush2.bf16.msra.mxu0 0
    %336 = vmatprep.subr.bf16.mxu0 0
    %337 = vmatpush2.bf16.msra.mxu0 0
    %338 = vmatprep.subr.bf16.mxu0 0
    %339 = vmatpush2.bf16.msra.mxu0 0
    %340 = vmatprep.subr.bf16.mxu0 0
    %341 = vmatpush2.bf16.msra.mxu0 0
    %342 = vmatprep.subr.bf16.mxu0 0
    %343 = vmatpush2.bf16.msra.mxu0 0
    %344 = vmatprep.subr.bf16.mxu0 0
    %345 = vmatpush2.bf16.msra.mxu0 0
    %346 = vmatprep.mubr.bf16.mxu0 0
    %347 = vmatmul.mubr.bf16.gmra.mxu0 %v312
    %v348 = vpop.f32.mrf.mxu0
    %v349 = vadd.f32 0.0, %v348
    %v350 = vpop.f32.mrf.mxu0
    %v351 = vpop.f32.mrf.mxu0
    %v352 = vadd.f32 0.0, %v351
    %v353 = vpop.f32.mrf.mxu0
    %354 = vdwg.mxu0
    %v355 = vadd.f32 %v161, %v349
    %v356 = vadd.f32 %v164, %v352
    %v357 = vld [vmem:[%s3] sm:$0xf]
    %v358 = vld [vmem:[%s3 + $0x4] sm:$0xf]
    %v359 = vld [vmem:[%s3 + $0x8] sm:$0xf]
    %v360 = vld [vmem:[%s3 + $0xc] sm:$0xf]
    %v361 = vld [vmem:[#allocation7] sm:$0x1]
    %v363 = vlaneseq
    %v364 = vshrl.u32 %v363, 7
    %v365 = vsub.s32 0, %v364
    %v366 = vrot.slane %v361, %v365
    %v372 = vunpack.c.l.b16 %v357
    %v373 = vunpack.c.l.b16 %v358
    %v374 = vunpack.c.l.b16 %v359
    %v375 = vunpack.c.l.b16 %v360
    %v376 = vpack.c.b16 %v373, %v372
    %v377 = vpack.c.b16 %v375, %v374
    %380 = vmatprep.subr.bf16.mxu0 0
    %381 = vmatpush1.bf16.msra.mxu0 0
    %382 = vmatprep.subr.bf16.mxu0 0
    %383 = vmatpush1.bf16.msra.mxu0 0
    %384 = vmatprep.subr.bf16.mxu0 0
    %385 = vmatpush1.bf16.msra.mxu0 0
    %386 = vmatprep.subr.bf16.mxu0 0
    %387 = vmatpush1.bf16.msra.mxu0 0
    %388 = vmatprep.subr.bf16.mxu0 0
    %389 = vmatpush1.bf16.msra.mxu0 0
    %390 = vmatprep.subr.bf16.mxu0 0
    %391 = vmatpush1.bf16.msra.mxu0 0
    %392 = vmatprep.subr.bf16.mxu0 0
    %393 = vmatpush1.bf16.msra.mxu0 %v377
    %394 = vmatprep.subr.bf16.mxu0 0
    %395 = vmatpush1.bf16.msra.mxu0 %v376
    %396 = vmatprep.subr.bf16.mxu0 0
    %397 = vmatpush2.bf16.msra.mxu0 0
    %398 = vmatprep.subr.bf16.mxu0 0
    %399 = vmatpush2.bf16.msra.mxu0 0
    %400 = vmatprep.subr.bf16.mxu0 0
    %401 = vmatpush2.bf16.msra.mxu0 0
    %402 = vmatprep.subr.bf16.mxu0 0
    %403 = vmatpush2.bf16.msra.mxu0 0
    %404 = vmatprep.subr.bf16.mxu0 0
    %405 = vmatpush2.bf16.msra.mxu0 0
    %406 = vmatprep.subr.bf16.mxu0 0
    %407 = vmatpush2.bf16.msra.mxu0 0
    %408 = vmatprep.subr.bf16.mxu0 0
    %409 = vmatpush2.bf16.msra.mxu0 0
    %410 = vmatprep.subr.bf16.mxu0 0
    %411 = vmatpush2.bf16.msra.mxu0 0
    %412 = vmatprep.mubr.bf16.mxu0 0
    %413 = vmatmul.mubr.bf16.gmra.mxu0 %v312
    %v414 = vpop.f32.mrf.mxu0
    %v415 = vadd.f32 %v366, %v414
    %v416 = vpop.f32.mrf.mxu0
    %v417 = vpop.f32.mrf.mxu0
    %v418 = vadd.f32 %v366, %v417
    %v419 = vpop.f32.mrf.mxu0
    %420 = vdwg.mxu0
    %423 = vrot.lane.b32.xlu0 %v415, 96
    %v424 = vpop.permute.xlu0 %423
    %425 = vrot.lane.b32.xlu0 %v418, 96
    %v426 = vpop.permute.xlu0 %425
    %v429 = vpack.c.bf16 %v418, %v415
    %v430 = vpack.c.bf16 %v426, %v424
    %431 = vmatprep.subr.bf16.mxu0 0
    %432 = vmatpush1.bf16.msra.mxu0 0
    %433 = vmatprep.subr.bf16.mxu0 0
    %434 = vmatpush1.bf16.msra.mxu0 0
    %435 = vmatprep.subr.bf16.mxu0 0
    %436 = vmatpush1.bf16.msra.mxu0 0
    %437 = vmatprep.subr.bf16.mxu0 0
    %438 = vmatpush1.bf16.msra.mxu0 0
    %439 = vmatprep.subr.bf16.mxu0 0
    %440 = vmatpush1.bf16.msra.mxu0 0
    %441 = vmatprep.subr.bf16.mxu0 0
    %442 = vmatpush1.bf16.msra.mxu0 0
    %443 = vmatprep.subr.bf16.mxu0 0
    %444 = vmatpush1.bf16.msra.mxu0 %v430
    %445 = vmatprep.subr.bf16.mxu0 0
    %446 = vmatpush1.bf16.msra.mxu0 %v429
    %447 = vmatprep.subr.bf16.mxu0 0
    %448 = vmatpush2.bf16.msra.mxu0 0
    %449 = vmatprep.subr.bf16.mxu0 0
    %450 = vmatpush2.bf16.msra.mxu0 0
    %451 = vmatprep.subr.bf16.mxu0 0
    %452 = vmatpush2.bf16.msra.mxu0 0
    %453 = vmatprep.subr.bf16.mxu0 0
    %454 = vmatpush2.bf16.msra.mxu0 0
    %455 = vmatprep.subr.bf16.mxu0 0
    %456 = vmatpush2.bf16.msra.mxu0 0
    %457 = vmatprep.subr.bf16.mxu0 0
    %458 = vmatpush2.bf16.msra.mxu0 0
    %459 = vmatprep.subr.bf16.mxu0 0
    %460 = vmatpush2.bf16.msra.mxu0 0
    %461 = vmatprep.subr.bf16.mxu0 0
    %462 = vmatpush2.bf16.msra.mxu0 0
    %463 = vmatprep.mubr.bf16.mxu0 0
    %464 = vmatmul.mubr.bf16.gmra.mxu0 %v236
    %v465 = vpop.f32.mrf.mxu0
    %v466 = vadd.f32 0.0, %v465
    %v467 = vpop.f32.mrf.mxu0
    %v468 = vpop.f32.mrf.mxu0
    %v469 = vadd.f32 0.0, %v468
    %v470 = vpop.f32.mrf.mxu0
    %471 = vdwg.mxu0
    %474 = vrot.lane.b32.xlu0 %v466, 64
    %v475 = vpop.permute.xlu0 %474
    %476 = vrot.lane.b32.xlu0 %v469, 64
    %v477 = vpop.permute.xlu0 %476
    %v480 = vadd.f32 %v415, %v475
    %v481 = vadd.f32 %v418, %v477
    %v482 = vmax.f32 %v480, 0.0
    %v483 = vmax.f32 %v481, 0.0
    %v484 = vpack.c.bf16 %v483, %v482
    %v485 = vld [vmem:[#allocation10] sm:$0xf]
    %v486 = vld [vmem:[#allocation10 + $0x4] sm:$0xf]
    %v487 = vld [vmem:[#allocation10 + $0x8] sm:$0xf]
    %v488 = vld [vmem:[#allocation10 + $0xc] sm:$0xf]
    %490 = vrot.lane.b32.xlu0 %v484, 64
    %v491 = vpop.permute.xlu0 %490
    %v496 = vunpack.c.l.b16 %v485
    %v497 = vunpack.c.l.b16 %v486
    %v498 = vunpack.c.l.b16 %v487
    %v499 = vunpack.c.l.b16 %v488
    %v500 = vpack.c.b16 %v497, %v496
    %v501 = vpack.c.b16 %v499, %v498
    %v505 = vsel %vm234, %v491, 0
    %507 = vmatprep.subr.bf16.mxu0 0
    %508 = vmatpush1.bf16.msra.mxu0 0
    %509 = vmatprep.subr.bf16.mxu0 0
    %510 = vmatpush1.bf16.msra.mxu0 0
    %511 = vmatprep.subr.bf16.mxu0 0
    %512 = vmatpush1.bf16.msra.mxu0 0
    %513 = vmatprep.subr.bf16.mxu0 0
    %514 = vmatpush1.bf16.msra.mxu0 0
    %515 = vmatprep.subr.bf16.mxu0 0
    %516 = vmatpush1.bf16.msra.mxu0 0
    %517 = vmatprep.subr.bf16.mxu0 0
    %518 = vmatpush1.bf16.msra.mxu0 0
    %519 = vmatprep.subr.bf16.mxu0 0
    %520 = vmatpush1.bf16.msra.mxu0 %v501
    %521 = vmatprep.subr.bf16.mxu0 0
    %522 = vmatpush1.bf16.msra.mxu0 %v500
    %523 = vmatprep.subr.bf16.mxu0 0
    %524 = vmatpush2.bf16.msra.mxu0 0
    %525 = vmatprep.subr.bf16.mxu0 0
    %526 = vmatpush2.bf16.msra.mxu0 0
    %527 = vmatprep.subr.bf16.mxu0 0
    %528 = vmatpush2.bf16.msra.mxu0 0
    %529 = vmatprep.subr.bf16.mxu0 0
    %530 = vmatpush2.bf16.msra.mxu0 0
    %531 = vmatprep.subr.bf16.mxu0 0
    %532 = vmatpush2.bf16.msra.mxu0 0
    %533 = vmatprep.subr.bf16.mxu0 0
    %534 = vmatpush2.bf16.msra.mxu0 0
    %535 = vmatprep.subr.bf16.mxu0 0
    %536 = vmatpush2.bf16.msra.mxu0 0
    %537 = vmatprep.subr.bf16.mxu0 0
    %538 = vmatpush2.bf16.msra.mxu0 0
    %539 = vmatprep.mubr.bf16.mxu0 0
    %540 = vmatmul.mubr.bf16.gmra.mxu0 %v505
    %v541 = vpop.f32.mrf.mxu0
    %v542 = vadd.f32 0.0, %v541
    %v543 = vpop.f32.mrf.mxu0
    %v544 = vpop.f32.mrf.mxu0
    %v545 = vadd.f32 0.0, %v544
    %v546 = vpop.f32.mrf.mxu0
    %547 = vdwg.mxu0
    %v548 = vadd.f32 %v355, %v542
    %v549 = vadd.f32 %v356, %v545
    %550 = vst [vmem:[#allocation11] sm:$0xff] %v548
    %551 = vst [vmem:[#allocation11 + $0x8] sm:$0xff] %v549
    // Predicated region
    $region62: #{tpu_custom_call.1} parent=1 // pred_check
      _
    $region63: #{tpu_custom_call.1} parent=1 // pred_check_branch
      %553 = sbr.rel (0) target = $region65
    $region64: #{tpu_custom_call.1} parent=1 // pred_region
      %s555 = ssub.s32 256, 256
      %556 = vsyncadd [#allocation4], %s555
      %s557 = sshll.u32 [#allocation11], 4
      %s558 = int_to_ptr.vmem [resolvable:$true] %s557
      %563 = dma.vmem_to_hbm [thread:$0]  %s558, 256, %s10, [#allocation4], 128, 128, 8
    $region65: #{tpu_custom_call.1} parent=1 // pred_fallthru
      _
    // Predicated region
    $region66: #{tpu_custom_call.1} parent=1 // pred_check
      _
    $region67: #{tpu_custom_call.1} parent=1 // pred_check_branch
      %565 = sbr.rel (0) target = $region69
    $region68: #{tpu_custom_call.1} parent=1 // pred_region
      %566 = dma.done [#allocation4], 256
    $region69: #{tpu_custom_call.1} parent=1 // pred_fallthru
      _
    %567 = vsyncpa [#allocation3], 1
    %568 = vsyncpa [#allocation6], 1
    %569 = vsyncpa [#allocation9], 1
    %570 = vsyncpa [#allocation4], 1

</llo_original>
